<compile_context>
chip_gen: v7x
topology: tpu7x:2x2x1
jax: 0.10.0
libtpu: 0.0.40
codegen_flags: <defaults>
</compile_context>

<pallas_src>
from functools import partial

import numpy as np
import jax
import jax.numpy as jnp
from jax.experimental import pallas as pl
from jax.experimental.pallas import tpu as pltpu


def _make_quantize_kernel(num_scales):
    """Kernel: one grid step per lane-tile of N; all scales fused."""

    def kernel(low_ref, fac_ref, pts_ref, out_ref):
        # pts_ref: (4, TILE_N) f32, rows = [batch_as_f32, x, y, z]
        pts = pts_ref[...]
        # Replicate the 4 input rows once per scale: (4*S, TILE_N). This is a
        # cheap in-VMEM sublane copy; HBM is only read once.
        rep = jnp.concatenate([pts] * num_scales, axis=0)
        # Per-row constants (4*S, 1) broadcast across lanes; batch rows use
        # (low=0, fac=1) so the whole block is one subtract + one multiply.
        idx_f = (rep - low_ref[...]) * fac_ref[...]
        # float->int cast truncates toward zero, matching torch .long().
        out_ref[...] = idx_f.astype(jnp.int32)  # single dense (4*S, TILE_N) store

    return kernel


def _quantize_all_scales(low_tab, fac_tab, pts4, tile_n):
    """pts4: (4, Npad) f32; low/fac: (4*S, 1) f32 -> (4*S, Npad) int32."""
    rows = low_tab.shape[0]           # 4 * S
    n_pad = pts4.shape[1]
    grid = (n_pad // tile_n,)
    return pl.pallas_call(
        _make_quantize_kernel(rows // 4),
        out_shape=jax.ShapeDtypeStruct((rows, n_pad), jnp.int32),
        grid=grid,
        in_specs=[
            pl.BlockSpec((rows, 1), lambda i: (0, 0)),     # low table
            pl.BlockSpec((rows, 1), lambda i: (0, 0)),     # factor table
            pl.BlockSpec((4, tile_n), lambda i: (0, i)),   # points (lane-tiled)
        ],
        out_specs=pl.BlockSpec((rows, tile_n), lambda i: (0, i)),
        compiler_params=pltpu.CompilerParams(
            dimension_semantics=("parallel",)),            # shard N tiles (v7x 2 TCs)
    )(low_tab, fac_tab, pts4)


@partial(jax.jit, static_argnames=("n_pad", "tile_n"))
def _voxelize_impl(points, batch_idx, low_tab, fac_tab, n_pad, tile_n):
    """Fused relayout (transpose+pad) + Pallas quantization, all under jit."""
    n = points.shape[0]
    pts3 = points[:, :3].astype(jnp.float32).T                 # (3, N)
    b = batch_idx.astype(jnp.float32)[None, :]                 # (1, N)
    pts4 = jnp.concatenate([b, pts3], axis=0)                  # (4, N)
    pts4 = jnp.pad(pts4, ((0, 0), (0, n_pad - n)))             # (4, Npad)
    return _quantize_all_scales(low_tab, fac_tab, pts4, tile_n)


class Voxelization:
    """JAX/Pallas port of the PyTorch `voxelization` module."""

    def __init__(self, coors_range_xyz, spatial_shape, scale_list):
        self.coors_range_xyz = coors_range_xyz
        self.spatial_shape = spatial_shape
        self.scale_list = list(scale_list) + [1]

        num_scales = len(self.scale_list)
        rows = 4 * num_scales
        lows = np.zeros((rows, 1), np.float32)
        facs = np.ones((rows, 1), np.float32)
        for si, scale in enumerate(self.scale_list):
            # row 4*si = batch passthrough: (b - 0) * 1
            for a in range(3):
                lo, hi = self.coors_range_xyz[a]
                lows[4 * si + 1 + a, 0] = lo
                facs[4 * si + 1 + a, 0] = (
                    np.ceil(self.spatial_shape[a] / scale) / (hi - lo))
        self.low_tab = jnp.asarray(lows)
        self.fac_tab = jnp.asarray(facs)

    def __call__(self, data_dict):
        points = jnp.asarray(data_dict['points'], jnp.float32)   # (N, >=3)
        batch_idx = jnp.asarray(data_dict['batch_idx'], jnp.int32)
        n = points.shape[0]

        # Lane tiling: single tile for small clouds, 2048-lane tiles otherwise.
        if n <= 2048:
            tile_n = max(128, ((n + 127) // 128) * 128)
            n_pad = tile_n
        else:
            tile_n = 2048
            n_pad = ((n + tile_n - 1) // tile_n) * tile_n

        out = _voxelize_impl(points, batch_idx, self.low_tab, self.fac_tab,
                             n_pad, tile_n)                       # (4*S, Npad) i32
        out = out[:, :n]                                          # drop padded tail

        for si, scale in enumerate(self.scale_list):
            bxyz_indx = out[4 * si:4 * si + 4, :].T               # (N, 4) int32
            # TODO(synk): torch.unique is dynamic-shape; computed eagerly with jnp.unique.
            unq, unq_inv, unq_cnt = jnp.unique(
                bxyz_indx, axis=0, return_inverse=True, return_counts=True)
            unq = jnp.concatenate([unq[:, 0:1], unq[:, [3, 2, 1]]], axis=1)
            data_dict['scale_{}'.format(scale)] = {
                'full_coors': bxyz_indx,
                'coors_inv': jnp.ravel(unq_inv),
                'coors': unq.astype(jnp.int32),
            }
        return data_dict


if __name__ == "__main__":
    key = jax.random.PRNGKey(0)
    k1, k2, k3, k4 = jax.random.split(key, 4)

    N = 200
    coors_range_xyz = [[-50.0, 50.0], [-50.0, 50.0], [-4.0, 2.0]]
    spatial_shape = [256, 256, 32]
    scale_list = [2, 4, 8]

    x = jax.random.uniform(k1, (N,), minval=-50.0, maxval=50.0)
    y = jax.random.uniform(k2, (N,), minval=-50.0, maxval=50.0)
    z = jax.random.uniform(k3, (N,), minval=-4.0, maxval=2.0)
    feats = jax.random.normal(k4, (N, 2))
    points = jnp.concatenate(
        [x[:, None], y[:, None], z[:, None], feats], axis=1).astype(jnp.float32)
    batch_idx = (jnp.arange(N) % 2).astype(jnp.int32)

    model = Voxelization(coors_range_xyz, spatial_shape, scale_list)
    data_dict = model({'points': points, 'batch_idx': batch_idx})

    for scale in scale_list + [1]:
        d = data_dict['scale_{}'.format(scale)]
        jax.block_until_ready(d['full_coors'])
        jax.block_until_ready(d['coors_inv'])
        jax.block_until_ready(d['coors'])

    # Lightweight correctness check against a pure-jnp reference (same f32 math).
    pc = points[:, :3]
    for si, scale in enumerate(model.scale_list):
        ref_rows = [batch_idx.astype(jnp.int32)]
        for a in range(3):
            lo = model.low_tab[4 * si + 1 + a, 0]
            fa = model.fac_tab[4 * si + 1 + a, 0]
            ref_rows.append(((pc[:, a] - lo) * fa).astype(jnp.int32))
        ref = jnp.stack(ref_rows, axis=1)
        np.testing.assert_array_equal(
            np.asarray(data_dict['scale_{}'.format(scale)]['full_coors']),
            np.asarray(ref))

    print("KERNEL_OK")
</pallas_src>

<mosaic_0001>
module attributes {stable_mosaic.version = 11 : i64} {
  func.func @kernel(%arg0: i32, %arg1: memref<16x1xf32, #tpu.memory_space<vmem>>, %arg2: memref<16x1xf32, #tpu.memory_space<vmem>>, %arg3: memref<4x256xf32, #tpu.memory_space<vmem>>, %arg4: memref<16x256xi32, #tpu.memory_space<vmem>>) attributes {dimension_semantics = [#tpu.dimension_semantics<parallel>], iteration_bounds = array<i64: 1>, scalar_prefetch = 0 : i64, scratch_operands = 0 : i64, tpu.core_type = #tpu.core_type<tc>, window_params = [{pipeline_mode = #tpu.pipeline_mode<synchronous>, transform_indices = @transform_0, window_bounds = array<i64: 16, 1>}, {pipeline_mode = #tpu.pipeline_mode<synchronous>, transform_indices = @transform_1, window_bounds = array<i64: 16, 1>}, {transform_indices = @transform_2, window_bounds = array<i64: 4, 256>}, {transform_indices = @transform_3, window_bounds = array<i64: 16, 256>}]} {
    %c0 = arith.constant 0 : index
    %c0_0 = arith.constant 0 : index
    %0 = vector.load %arg3[%c0, %c0_0] : memref<4x256xf32, #tpu.memory_space<vmem>>, vector<4x256xf32>
    %1 = tpu.concatenate %0, %0, %0, %0 in 0 : vector<4x256xf32>, vector<4x256xf32>, vector<4x256xf32>, vector<4x256xf32> -> vector<16x256xf32>
    %c0_1 = arith.constant 0 : index
    %c0_2 = arith.constant 0 : index
    %2 = vector.load %arg1[%c0_1, %c0_2] : memref<16x1xf32, #tpu.memory_space<vmem>>, vector<16x1xf32>
    %3 = vector.broadcast %2 : vector<16x1xf32> to vector<16x256xf32>
    %4 = arith.subf %1, %3 : vector<16x256xf32>
    %c0_3 = arith.constant 0 : index
    %c0_4 = arith.constant 0 : index
    %5 = vector.load %arg2[%c0_3, %c0_4] : memref<16x1xf32, #tpu.memory_space<vmem>>, vector<16x1xf32>
    %6 = vector.broadcast %5 : vector<16x1xf32> to vector<16x256xf32>
    %7 = arith.mulf %4, %6 : vector<16x256xf32>
    %8 = arith.fptosi %7 : vector<16x256xf32> to vector<16x256xi32>
    %c0_5 = arith.constant 0 : index
    %c0_6 = arith.constant 0 : index
    %9 = vector.load %arg4[%c0_5, %c0_6] : memref<16x256xi32, #tpu.memory_space<vmem>>, vector<16x256xi32>
    tpu.vector_store %arg4[%c0_5, %c0_6], %8 {strides = array<i32>} : memref<16x256xi32, #tpu.memory_space<vmem>>, vector<16x256xi32>,
    return
  }
  func.func @transform_0(%arg0: i32) -> (i32, i32) {
    %c0_i32 = arith.constant 0 : i32
    %c0_i32_0 = arith.constant 0 : i32
    %c0_i32_1 = arith.constant 0 : i32
    return %c0_i32, %c0_i32_0 : i32, i32
  }
  func.func @transform_1(%arg0: i32) -> (i32, i32) {
    %c0_i32 = arith.constant 0 : i32
    %c0_i32_0 = arith.constant 0 : i32
    %c0_i32_1 = arith.constant 0 : i32
    return %c0_i32, %c0_i32_0 : i32, i32
  }
  func.func @transform_2(%arg0: i32) -> (i32, i32) {
    %c0_i32 = arith.constant 0 : i32
    %c0_i32_0 = arith.constant 0 : i32
    return %c0_i32, %arg0 : i32, i32
  }
  func.func @transform_3(%arg0: i32) -> (i32, i32) {
    %c0_i32 = arith.constant 0 : i32
    %c0_i32_0 = arith.constant 0 : i32
    return %c0_i32, %arg0 : i32, i32
  }
}

</mosaic_0001>

<llo_original>
// kernel: _voxelize_impl.1
$region0: #{_voxelize_impl.1}
  #allocation0 [shape = 'u32[]', space=smem, size = 0x4, offset = 0x4, fixed_abs, tag = 'smem constant byte address 0x4 - core index']
  #allocation1 [shape = 'u32[144,128]{1,0:T(1,128)}', space=vmem, size = 0x12000, scoped, tag = 'internal scratch']
  %s0 = inlined_call_operand.vmem [shape: f32[16,1], index: 0, kind: input, shape index: {}]
  %s1 = inlined_call_operand.vmem [shape: f32[16,1], index: 1, kind: input, shape index: {}]
  %s2 = inlined_call_operand.vmem [shape: f32[4,256], index: 2, kind: input, shape index: {}]
  %s3 = inlined_call_operand.hbm [shape: s32[16,256], index: 3, kind: output, shape index: {}]
  %s4 = sld [smem:[#allocation0]]
  $region22: #{_voxelize_impl.1} parent=0
    _
  %s6 = ssub.s32 1, %s4
  %s7 = scalar_select 0, %s6, %s4
  $region1: #{_voxelize_impl.1} parent=0
    #allocation2 [shape = 'u8[16384]{0}', space=vmem, size = 0x4000, scoped, tag = 'output window, operand 0, single buffered']
    #allocation3 [shape = 's32[1]{0}', space=sflag, size = 0x4, scoped, tag = 'scoped memory for _voxelize_impl.1']
    %8 = vsyncpa [#allocation3], 0
    // Predicated region
    $region2: #{_voxelize_impl.1} parent=1 // pred_check
      _
    $region3: #{_voxelize_impl.1} parent=1 // pred_check_branch
      %10 = sbr.rel (0) target = $region5
    $region4: #{_voxelize_impl.1} parent=1 // pred_region
      _
    $region5: #{_voxelize_impl.1} parent=1 // pred_fallthru
      _
    // Predicated region
    $region6: #{_voxelize_impl.1} parent=1 // pred_check
      _
    $region7: #{_voxelize_impl.1} parent=1 // pred_check_branch
      %12 = sbr.rel (0) target = $region9
    $region8: #{_voxelize_impl.1} parent=1 // pred_region
      _
    $region9: #{_voxelize_impl.1} parent=1 // pred_fallthru
      _
    // Predicated region
    $region10: #{_voxelize_impl.1} parent=1 // pred_check
      _
    $region11: #{_voxelize_impl.1} parent=1 // pred_check_branch
      %14 = sbr.rel (0) target = $region13
    $region12: #{_voxelize_impl.1} parent=1 // pred_region
      _
    $region13: #{_voxelize_impl.1} parent=1 // pred_fallthru
      _
    %v15 = vld [vmem:[%s2] sm:$0xff]
    %v17 = vcombine.high %v15, %v15
    %v19 = vcombine.low %v15, %v15
    %vm21 = vcmask 1043456
    %v22 = vsel %vm21, %v15, %v19
    %v23 = vsel %vm21, %v17, %v15
    %v24 = vld [vmem:[%s0] sm:$0xff]
    %v25 = vld [vmem:[%s0 + $0x8] sm:$0xff]
    %27 = vset.pattern.permute.xlu0 0
    %28 = vperm.xlu0 %27, %v24
    %v29 = vpop.permute.xlu0 %28
    %32 = vset.pattern.permute.xlu0 0
    %33 = vperm.xlu0 %32, %v25
    %v34 = vpop.permute.xlu0 %33
    %v36 = vsub.f32 %v22, %v29
    %v37 = vsub.f32 %v23, %v29
    %v38 = vsub.f32 %v22, %v34
    %v39 = vsub.f32 %v23, %v34
    %v40 = vld [vmem:[%s1] sm:$0xff]
    %v41 = vld [vmem:[%s1 + $0x8] sm:$0xff]
    %43 = vset.pattern.permute.xlu0 0
    %44 = vperm.xlu0 %43, %v40
    %v45 = vpop.permute.xlu0 %44
    %48 = vset.pattern.permute.xlu0 0
    %49 = vperm.xlu0 %48, %v41
    %v50 = vpop.permute.xlu0 %49
    %v52 = vmul.f32 %v36, %v45
    %v53 = vmul.f32 %v37, %v45
    %v54 = vmul.f32 %v38, %v50
    %v55 = vmul.f32 %v39, %v50
    %v56 = vcvt.f32.s32.to.zero.pseudo %v52
    %v57 = vcvt.f32.s32.to.zero.pseudo %v53
    %v58 = vcvt.f32.s32.to.zero.pseudo %v54
    %v59 = vcvt.f32.s32.to.zero.pseudo %v55
    %60 = vst [vmem:[#allocation2] sm:$0xff] %v56
    %61 = vst [vmem:[#allocation2 + $0x8] sm:$0xff] %v57
    %62 = vst [vmem:[#allocation2 + $0x10] sm:$0xff] %v58
    %63 = vst [vmem:[#allocation2 + $0x18] sm:$0xff] %v59
    // Predicated region
    $region14: #{_voxelize_impl.1} parent=1 // pred_check
      _
    $region15: #{_voxelize_impl.1} parent=1 // pred_check_branch
      %65 = sbr.rel (0) target = $region17
    $region16: #{_voxelize_impl.1} parent=1 // pred_region
      %s67 = ssub.s32 512, 512
      %68 = vsyncadd [#allocation3], %s67
      %s69 = sshll.u32 [#allocation2], 4
      %s70 = int_to_ptr.vmem [resolvable:$true] %s69
      %75 = dma.vmem_to_hbm [thread:$0]  %s70, 512, %s3, [#allocation3], 256, 256, 16
    $region17: #{_voxelize_impl.1} parent=1 // pred_fallthru
      _
    // Predicated region
    $region18: #{_voxelize_impl.1} parent=1 // pred_check
      _
    $region19: #{_voxelize_impl.1} parent=1 // pred_check_branch
      %77 = sbr.rel (0) target = $region21
    $region20: #{_voxelize_impl.1} parent=1 // pred_region
      %78 = dma.done [#allocation3], 512
    $region21: #{_voxelize_impl.1} parent=1 // pred_fallthru
      _
    %79 = vsyncpa [#allocation3], 1

</llo_original>
